<compile_context>
chip_gen: v5e
topology: v5e:2x2
jax: 0.10.0
libtpu: 0.0.40
codegen_flags: <defaults>
</compile_context>

<pallas_src>
import jax
import jax.numpy as jnp
from jax.experimental import pallas as pl
from jax.experimental.pallas import tpu as pltpu

_HIDDEN_PAD = 128  # all hidden activations kept at 128 lanes


def _mlp_kernel(x_ref,
                w1_ref, b1_ref,
                w2_ref, b2_ref,
                w3_ref, b3_ref,
                w4_ref, b4_ref,
                o_ref):
    # Layer 1: Linear(input_size, 128) + ReLU   (Dropout -> identity in eval)
    h = jnp.dot(x_ref[...], w1_ref[...], preferred_element_type=jnp.float32) + b1_ref[...]
    h = jnp.maximum(h, 0.0)

    # Layer 2: Linear(128, 64) + ReLU, zero-padded to 128 lanes
    h = jnp.dot(h.astype(w2_ref.dtype), w2_ref[...],
                preferred_element_type=jnp.float32) + b2_ref[...]
    h = jnp.maximum(h, 0.0)

    # Layer 3: Linear(64, 32) + ReLU, zero-padded to 128 lanes
    h = jnp.dot(h.astype(w3_ref.dtype), w3_ref[...],
                preferred_element_type=jnp.float32) + b3_ref[...]
    h = jnp.maximum(h, 0.0)

    # Layer 4: Linear(32, 1) as VPU broadcast-multiply + lane reduction
    # (avoids an N=1 MXU matmul and its lane-sparse result path).
    w4_row = w4_ref[...].astype(jnp.float32)            # (1, 128), zero-padded
    o_ref[...] = jnp.sum(h * w4_row, axis=-1, keepdims=True) + b4_ref[...]


def _prepare_params(params, compute_dtype):
    """Pad hidden widths to 128 lanes, transpose w4 into a row, cast weights."""
    w1, b1, w2, b2, w3, b3, w4, b4 = params
    H = _HIDDEN_PAD
    w2p = jnp.zeros((H, H), jnp.float32).at[:, :w2.shape[1]].set(w2)
    b2p = jnp.zeros((1, H), jnp.float32).at[:, :w2.shape[1]].set(b2.reshape(1, -1))
    w3p = jnp.zeros((H, H), jnp.float32).at[:w3.shape[0], :w3.shape[1]].set(w3)
    b3p = jnp.zeros((1, H), jnp.float32).at[:, :w3.shape[1]].set(b3.reshape(1, -1))
    w4p = jnp.zeros((1, H), jnp.float32).at[:, :w4.shape[0]].set(w4.reshape(1, -1))
    b4p = b4.reshape(1, 1).astype(jnp.float32)
    cd = compute_dtype
    # Weights in compute dtype (bf16 fast path on v6e/v7x); biases stay f32.
    return (w1.astype(cd), b1.reshape(1, -1).astype(jnp.float32),
            w2p.astype(cd), b2p,
            w3p.astype(cd), b3p,
            w4p.astype(cd), b4p)


def house_classifier_forward(x, params, *, tile_b=8192, compute_dtype=jnp.float32):
    """Fused MLP forward, tiled over the batch dimension.

    tile_b: rows per grid step (multiple of 8). 4K-32K is the sweet spot for
            large batches; raise pltpu.CompilerParams(vmem_limit_bytes=...) if
            you push past the default scoped VMEM limit (v7x has only 64 MiB
            physical VMEM, so halve the tile you'd use on v6e).
    compute_dtype: jnp.float32 (default, best on v5e) or jnp.bfloat16
            (halves HBM traffic and hits the bf16 MXU path on v6e/v7x);
            accumulation is always f32 via preferred_element_type.
    """
    B, F = x.shape
    H = _HIDDEN_PAD
    prepped = _prepare_params(params, compute_dtype)
    x = x.astype(compute_dtype)

    # Clamp tile to (padded) batch and round to a multiple of 8 sublanes.
    tile_b = max(8, min(int(tile_b), ((B + 7) // 8) * 8))
    tile_b = ((tile_b + 7) // 8) * 8
    b_pad = pl.cdiv(B, tile_b) * tile_b
    if b_pad != B:
        x = jnp.pad(x, ((0, b_pad - B), (0, 0)))

    grid = (b_pad // tile_b,)

    def resident(shape):
        # Weights/biases: same block every grid step -> DMA'd once, VMEM-resident.
        return pl.BlockSpec(shape, lambda i: (0, 0))

    out = pl.pallas_call(
        _mlp_kernel,
        out_shape=jax.ShapeDtypeStruct((b_pad, 1), jnp.float32),
        grid=grid,
        in_specs=[
            pl.BlockSpec((tile_b, F), lambda i: (i, 0)),   # x: streamed over batch
            resident((F, H)), resident((1, H)),            # layer 1
            resident((H, H)), resident((1, H)),            # layer 2 (padded)
            resident((H, H)), resident((1, H)),            # layer 3 (padded)
            resident((1, H)), resident((1, 1)),            # layer 4 row + bias
        ],
        out_specs=pl.BlockSpec((tile_b, 1), lambda i: (i, 0)),
        compiler_params=pltpu.CompilerParams(
            dimension_semantics=("parallel",),             # megacore on v7x
        ),
    )(x, *prepped)
    return out[:B]


def init_params(key, input_size):
    """Deterministic init mimicking PyTorch nn.Linear (uniform +-1/sqrt(fan_in)).
    Weights stored [in, out]; biases [1, out]."""
    dims = [(input_size, 128), (128, 64), (64, 32), (32, 1)]
    params = []
    for (fan_in, fan_out) in dims:
        key, kw, kb = jax.random.split(key, 3)
        bound = 1.0 / (fan_in ** 0.5)
        w = jax.random.uniform(kw, (fan_in, fan_out), jnp.float32, -bound, bound)
        b = jax.random.uniform(kb, (1, fan_out), jnp.float32, -bound, bound)
        params.extend([w, b])
    return tuple(params)


def reference_forward(x, params):
    (w1, b1, w2, b2, w3, b3, w4, b4) = params
    h = jnp.maximum(x @ w1 + b1, 0.0)
    h = jnp.maximum(h @ w2 + b2, 0.0)
    h = jnp.maximum(h @ w3 + b3, 0.0)
    return h @ w4 + b4


if __name__ == "__main__":
    key = jax.random.PRNGKey(0)
    key, kx, kx2 = jax.random.split(key, 3)

    batch = 8
    input_size = 32  # number of house features

    x = jax.random.normal(kx, (batch, input_size), dtype=jnp.float32)
    params = init_params(key, input_size)

    # f32 path, tiny batch (single grid step)
    out = jax.block_until_ready(house_classifier_forward(x, params, tile_b=8))
    ref = reference_forward(x, params)
    assert out.shape == (batch, 1)
    assert jnp.allclose(out, ref, atol=1e-4, rtol=1e-4)

    # f32 path with a real grid: non-multiple batch exercises padding + pipelining
    x2 = jax.random.normal(kx2, (300, input_size), dtype=jnp.float32)
    out2 = jax.block_until_ready(house_classifier_forward(x2, params, tile_b=128))
    ref2 = reference_forward(x2, params)
    assert out2.shape == (300, 1)
    assert jnp.allclose(out2, ref2, atol=1e-4, rtol=1e-4)

    # bf16 fast path (v6e/v7x MXU + halved HBM bytes); loose tolerance vs f32 ref
    out_bf16 = jax.block_until_ready(
        house_classifier_forward(x, params, tile_b=8, compute_dtype=jnp.bfloat16))
    assert out_bf16.shape == (batch, 1)
    assert jnp.allclose(out_bf16, ref, atol=5e-2, rtol=5e-2)

    print("KERNEL_OK")
</pallas_src>

<mosaic_0001>
module attributes {stable_mosaic.version = 11 : i64} {
  func.func @_mlp_kernel(%arg0: i32, %arg1: memref<8x32xf32, #tpu.memory_space<vmem>>, %arg2: memref<32x128xf32, #tpu.memory_space<vmem>>, %arg3: memref<1x128xf32, #tpu.memory_space<vmem>>, %arg4: memref<128x128xf32, #tpu.memory_space<vmem>>, %arg5: memref<1x128xf32, #tpu.memory_space<vmem>>, %arg6: memref<128x128xf32, #tpu.memory_space<vmem>>, %arg7: memref<1x128xf32, #tpu.memory_space<vmem>>, %arg8: memref<1x128xf32, #tpu.memory_space<vmem>>, %arg9: memref<1x1xf32, #tpu.memory_space<vmem>>, %arg10: memref<8x1xf32, #tpu.memory_space<vmem>>) attributes {dimension_semantics = [#tpu.dimension_semantics<parallel>], iteration_bounds = array<i64: 1>, scalar_prefetch = 0 : i64, scratch_operands = 0 : i64, tpu.core_type = #tpu.core_type<tc>, window_params = [{transform_indices = @transform_0, window_bounds = array<i64: 8, 32>}, {pipeline_mode = #tpu.pipeline_mode<synchronous>, transform_indices = @transform_1, window_bounds = array<i64: 32, 128>}, {pipeline_mode = #tpu.pipeline_mode<synchronous>, transform_indices = @transform_2, window_bounds = array<i64: 1, 128>}, {pipeline_mode = #tpu.pipeline_mode<synchronous>, transform_indices = @transform_3, window_bounds = array<i64: 128, 128>}, {pipeline_mode = #tpu.pipeline_mode<synchronous>, transform_indices = @transform_4, window_bounds = array<i64: 1, 128>}, {pipeline_mode = #tpu.pipeline_mode<synchronous>, transform_indices = @transform_5, window_bounds = array<i64: 128, 128>}, {pipeline_mode = #tpu.pipeline_mode<synchronous>, transform_indices = @transform_6, window_bounds = array<i64: 1, 128>}, {pipeline_mode = #tpu.pipeline_mode<synchronous>, transform_indices = @transform_7, window_bounds = array<i64: 1, 128>}, {pipeline_mode = #tpu.pipeline_mode<synchronous>, transform_indices = @transform_8, window_bounds = array<i64: 1, 1>}, {transform_indices = @transform_9, window_bounds = array<i64: 8, 1>}]} {
    %c0 = arith.constant 0 : index
    %c0_0 = arith.constant 0 : index
    %0 = vector.load %arg1[%c0, %c0_0] : memref<8x32xf32, #tpu.memory_space<vmem>>, vector<8x32xf32>
    %c0_1 = arith.constant 0 : index
    %c0_2 = arith.constant 0 : index
    %1 = vector.load %arg2[%c0_1, %c0_2] : memref<32x128xf32, #tpu.memory_space<vmem>>, vector<32x128xf32>
    %cst = arith.constant dense<0.000000e+00> : vector<8x128xf32>
    %2 = tpu.matmul %0, %1, %cst {dimension_numbers = #tpu.dot_dimension_numbers<[1], [0], [0], [1], [0, 0, 1, 1], [], []>} : vector<8x32xf32>, vector<32x128xf32>, vector<8x128xf32> -> vector<8x128xf32>
    %c0_3 = arith.constant 0 : index
    %c0_4 = arith.constant 0 : index
    %3 = vector.load %arg3[%c0_3, %c0_4] : memref<1x128xf32, #tpu.memory_space<vmem>>, vector<1x128xf32>
    %4 = vector.broadcast %3 : vector<1x128xf32> to vector<8x128xf32>
    %5 = arith.addf %2, %4 : vector<8x128xf32>
    %cst_5 = arith.constant 0.000000e+00 : f32
    %6 = vector.broadcast %cst_5 : f32 to vector<8x128xf32>
    %7 = arith.maximumf %5, %6 : vector<8x128xf32>
    %c0_6 = arith.constant 0 : index
    %c0_7 = arith.constant 0 : index
    %8 = vector.load %arg4[%c0_6, %c0_7] : memref<128x128xf32, #tpu.memory_space<vmem>>, vector<128x128xf32>
    %cst_8 = arith.constant dense<0.000000e+00> : vector<8x128xf32>
    %9 = tpu.matmul %7, %8, %cst_8 {dimension_numbers = #tpu.dot_dimension_numbers<[1], [0], [0], [1], [0, 0, 1, 1], [], []>} : vector<8x128xf32>, vector<128x128xf32>, vector<8x128xf32> -> vector<8x128xf32>
    %c0_9 = arith.constant 0 : index
    %c0_10 = arith.constant 0 : index
    %10 = vector.load %arg5[%c0_9, %c0_10] : memref<1x128xf32, #tpu.memory_space<vmem>>, vector<1x128xf32>
    %11 = vector.broadcast %10 : vector<1x128xf32> to vector<8x128xf32>
    %12 = arith.addf %9, %11 : vector<8x128xf32>
    %cst_11 = arith.constant 0.000000e+00 : f32
    %13 = vector.broadcast %cst_11 : f32 to vector<8x128xf32>
    %14 = arith.maximumf %12, %13 : vector<8x128xf32>
    %c0_12 = arith.constant 0 : index
    %c0_13 = arith.constant 0 : index
    %15 = vector.load %arg6[%c0_12, %c0_13] : memref<128x128xf32, #tpu.memory_space<vmem>>, vector<128x128xf32>
    %cst_14 = arith.constant dense<0.000000e+00> : vector<8x128xf32>
    %16 = tpu.matmul %14, %15, %cst_14 {dimension_numbers = #tpu.dot_dimension_numbers<[1], [0], [0], [1], [0, 0, 1, 1], [], []>} : vector<8x128xf32>, vector<128x128xf32>, vector<8x128xf32> -> vector<8x128xf32>
    %c0_15 = arith.constant 0 : index
    %c0_16 = arith.constant 0 : index
    %17 = vector.load %arg7[%c0_15, %c0_16] : memref<1x128xf32, #tpu.memory_space<vmem>>, vector<1x128xf32>
    %18 = vector.broadcast %17 : vector<1x128xf32> to vector<8x128xf32>
    %19 = arith.addf %16, %18 : vector<8x128xf32>
    %cst_17 = arith.constant 0.000000e+00 : f32
    %20 = vector.broadcast %cst_17 : f32 to vector<8x128xf32>
    %21 = arith.maximumf %19, %20 : vector<8x128xf32>
    %c0_18 = arith.constant 0 : index
    %c0_19 = arith.constant 0 : index
    %22 = vector.load %arg8[%c0_18, %c0_19] : memref<1x128xf32, #tpu.memory_space<vmem>>, vector<1x128xf32>
    %23 = vector.broadcast %22 : vector<1x128xf32> to vector<8x128xf32>
    %24 = arith.mulf %21, %23 : vector<8x128xf32>
    %cst_20 = arith.constant dense<0.000000e+00> : vector<8xf32>
    %25 = vector.multi_reduction <add>, %24, %cst_20 [1] : vector<8x128xf32> to vector<8xf32>
    %26 = vector.shape_cast %25 : vector<8xf32> to vector<8x1xf32>
    %c0_21 = arith.constant 0 : index
    %c0_22 = arith.constant 0 : index
    %27 = vector.load %arg9[%c0_21, %c0_22] : memref<1x1xf32, #tpu.memory_space<vmem>>, vector<1x1xf32>
    %28 = vector.broadcast %27 : vector<1x1xf32> to vector<8x1xf32>
    %29 = arith.addf %26, %28 : vector<8x1xf32>
    %c0_23 = arith.constant 0 : index
    %c0_24 = arith.constant 0 : index
    %30 = vector.load %arg10[%c0_23, %c0_24] : memref<8x1xf32, #tpu.memory_space<vmem>>, vector<8x1xf32>
    tpu.vector_store %arg10[%c0_23, %c0_24], %29 {strides = array<i32>} : memref<8x1xf32, #tpu.memory_space<vmem>>, vector<8x1xf32>,
    return
  }
  func.func @transform_0(%arg0: i32) -> (i32, i32) {
    %c0_i32 = arith.constant 0 : i32
    %c0_i32_0 = arith.constant 0 : i32
    return %arg0, %c0_i32 : i32, i32
  }
  func.func @transform_1(%arg0: i32) -> (i32, i32) {
    %c0_i32 = arith.constant 0 : i32
    %c0_i32_0 = arith.constant 0 : i32
    %c0_i32_1 = arith.constant 0 : i32
    return %c0_i32, %c0_i32_0 : i32, i32
  }
  func.func @transform_2(%arg0: i32) -> (i32, i32) {
    %c0_i32 = arith.constant 0 : i32
    %c0_i32_0 = arith.constant 0 : i32
    %c0_i32_1 = arith.constant 0 : i32
    return %c0_i32, %c0_i32_0 : i32, i32
  }
  func.func @transform_3(%arg0: i32) -> (i32, i32) {
    %c0_i32 = arith.constant 0 : i32
    %c0_i32_0 = arith.constant 0 : i32
    %c0_i32_1 = arith.constant 0 : i32
    return %c0_i32, %c0_i32_0 : i32, i32
  }
  func.func @transform_4(%arg0: i32) -> (i32, i32) {
    %c0_i32 = arith.constant 0 : i32
    %c0_i32_0 = arith.constant 0 : i32
    %c0_i32_1 = arith.constant 0 : i32
    return %c0_i32, %c0_i32_0 : i32, i32
  }
  func.func @transform_5(%arg0: i32) -> (i32, i32) {
    %c0_i32 = arith.constant 0 : i32
    %c0_i32_0 = arith.constant 0 : i32
    %c0_i32_1 = arith.constant 0 : i32
    return %c0_i32, %c0_i32_0 : i32, i32
  }
  func.func @transform_6(%arg0: i32) -> (i32, i32) {
    %c0_i32 = arith.constant 0 : i32
    %c0_i32_0 = arith.constant 0 : i32
    %c0_i32_1 = arith.constant 0 : i32
    return %c0_i32, %c0_i32_0 : i32, i32
  }
  func.func @transform_7(%arg0: i32) -> (i32, i32) {
    %c0_i32 = arith.constant 0 : i32
    %c0_i32_0 = arith.constant 0 : i32
    %c0_i32_1 = arith.constant 0 : i32
    return %c0_i32, %c0_i32_0 : i32, i32
  }
  func.func @transform_8(%arg0: i32) -> (i32, i32) {
    %c0_i32 = arith.constant 0 : i32
    %c0_i32_0 = arith.constant 0 : i32
    %c0_i32_1 = arith.constant 0 : i32
    return %c0_i32, %c0_i32_0 : i32, i32
  }
  func.func @transform_9(%arg0: i32) -> (i32, i32) {
    %c0_i32 = arith.constant 0 : i32
    %c0_i32_0 = arith.constant 0 : i32
    return %arg0, %c0_i32 : i32, i32
  }
}

</mosaic_0001>

<llo_original>
// kernel: tpu_custom_call.1
$region0: #{tpu_custom_call.1}
  #allocation0 [shape = 'u32[]', space=smem, size = 0x4, offset = 0x4, fixed_abs, tag = 'smem constant byte address 0x4 - core index']
  #allocation1 [shape = 'u32[72,128]{1,0:T(1,128)}', space=vmem, size = 0x9000, scoped, tag = 'internal scratch']
  #allocation2 [shape = 'f32[1,1]{1,0:T(1,128)S(1)}', space=vmem, size = 0x200, scoped, tag = 'scoped memory for tpu_custom_call.1']
  %s0 = inlined_call_operand.hbm [shape: f32[8,32], index: 0, kind: input, shape index: {}]
  %s1 = inlined_call_operand.hbm [shape: f32[32,128], index: 1, kind: input, shape index: {}]
  %s2 = inlined_call_operand.vmem [shape: f32[1,128], index: 2, kind: input, shape index: {}]
  %s3 = inlined_call_operand.hbm [shape: f32[128,128], index: 3, kind: input, shape index: {}]
  %s4 = inlined_call_operand.vmem [shape: f32[1,128], index: 4, kind: input, shape index: {}]
  %s5 = inlined_call_operand.hbm [shape: f32[128,128], index: 5, kind: input, shape index: {}]
  %s6 = inlined_call_operand.vmem [shape: f32[1,128], index: 6, kind: input, shape index: {}]
  %s7 = inlined_call_operand.vmem [shape: f32[1,128], index: 7, kind: input, shape index: {}]
  %s8 = inlined_call_operand.<no memory space> [shape: f32[1,1], index: 8, kind: input, shape index: {}]
  %s9 = inlined_call_operand.vmem [shape: f32[8,1], index: 9, kind: output, shape index: {}]
  %s10 = sld [smem:[#allocation0]]
  $region62: #{tpu_custom_call.1} parent=0
    _
  %s12 = ssub.s32 1, %s10
  %s13 = scalar_select 0, %s12, %s10
  %v14 = vstv %s8
  %15 = vst [vmem:[#allocation2] sm:$0x1] %v14
  $region1: #{tpu_custom_call.1} parent=0
    #allocation3 [shape = 'u8[4096]{0}', space=vmem, size = 0x1000, scoped, tag = 'input window, operand 0, single buffered']
    #allocation4 [shape = 's32[1]{0}', space=sflag, size = 0x4, scoped, tag = 'scoped memory for tpu_custom_call.1']
    #allocation5 [shape = 'u8[16384]{0}', space=vmem, size = 0x4000, scoped, tag = 'input window, operand 1, single buffered']
    #allocation6 [shape = 's32[1]{0}', space=sflag, size = 0x4, scoped, tag = 'scoped memory for tpu_custom_call.1']
    #allocation7 [shape = 'u8[65536]{0}', space=vmem, size = 0x10000, scoped, tag = 'input window, operand 3, single buffered']
    #allocation8 [shape = 'u8[65536]{0}', space=vmem, size = 0x10000, scoped, tag = 'input window, operand 5, single buffered']
    #allocation9 [shape = 's32[1]{0}', space=sflag, size = 0x4, scoped, tag = 'scoped memory for tpu_custom_call.1']
    %16 = vsyncpa [#allocation4], 0
    %17 = vsyncpa [#allocation6], 0
    %18 = vsyncpa [#allocation9], 0
    // Predicated region
    $region2: #{tpu_custom_call.1} parent=1 // pred_check
      _
    $region3: #{tpu_custom_call.1} parent=1 // pred_check_branch
      %20 = sbr.rel (0) target = $region5
    $region4: #{tpu_custom_call.1} parent=1 // pred_region
      %22 = vsyncadd [#allocation4], 0
      %s24 = sshll.u32 %s0, 4
      %s25 = int_to_ptr.hbm [resolvable:$true] %s24
      %s26 = sshll.u32 [#allocation3], 4
      %s27 = int_to_ptr.vmem [resolvable:$true] %s26
      %29 = dma.hbm_to_vmem [thread:$0]  %s25, 128, %s27, [#allocation4]
    $region5: #{tpu_custom_call.1} parent=1 // pred_fallthru
      _
    // Predicated region
    $region6: #{tpu_custom_call.1} parent=1 // pred_check
      _
    $region7: #{tpu_custom_call.1} parent=1 // pred_check_branch
      %31 = sbr.rel (0) target = $region9
    $region8: #{tpu_custom_call.1} parent=1 // pred_region
      %33 = vsyncadd [#allocation6], 0
      %s34 = sshll.u32 %s1, 4
      %s35 = int_to_ptr.hbm [resolvable:$true] %s34
      %s36 = sshll.u32 [#allocation5], 4
      %s37 = int_to_ptr.vmem [resolvable:$true] %s36
      %42 = dma.hbm_to_vmem [thread:$0]  %s35, 512, %s37, [#allocation6], 128, 128, 8
    $region9: #{tpu_custom_call.1} parent=1 // pred_fallthru
      _
    // Predicated region
    $region10: #{tpu_custom_call.1} parent=1 // pred_check
      _
    $region11: #{tpu_custom_call.1} parent=1 // pred_check_branch
      %44 = sbr.rel (0) target = $region13
    $region12: #{tpu_custom_call.1} parent=1 // pred_region
      _
    $region13: #{tpu_custom_call.1} parent=1 // pred_fallthru
      _
    // Predicated region
    $region14: #{tpu_custom_call.1} parent=1 // pred_check
      _
    $region15: #{tpu_custom_call.1} parent=1 // pred_check_branch
      %46 = sbr.rel (0) target = $region17
    $region16: #{tpu_custom_call.1} parent=1 // pred_region
      %48 = vsyncadd [#allocation6], 0
      %s49 = sshll.u32 %s3, 4
      %s50 = int_to_ptr.hbm [resolvable:$true] %s49
      %s51 = sshll.u32 [#allocation7], 4
      %s52 = int_to_ptr.vmem [resolvable:$true] %s51
      %57 = dma.hbm_to_vmem [thread:$0]  %s50, 2048, %s52, [#allocation6], 128, 128, 8
    $region17: #{tpu_custom_call.1} parent=1 // pred_fallthru
      _
    // Predicated region
    $region18: #{tpu_custom_call.1} parent=1 // pred_check
      _
    $region19: #{tpu_custom_call.1} parent=1 // pred_check_branch
      %59 = sbr.rel (0) target = $region21
    $region20: #{tpu_custom_call.1} parent=1 // pred_region
      _
    $region21: #{tpu_custom_call.1} parent=1 // pred_fallthru
      _
    // Predicated region
    $region22: #{tpu_custom_call.1} parent=1 // pred_check
      _
    $region23: #{tpu_custom_call.1} parent=1 // pred_check_branch
      %61 = sbr.rel (0) target = $region25
    $region24: #{tpu_custom_call.1} parent=1 // pred_region
      %63 = vsyncadd [#allocation9], 0
      %s64 = sshll.u32 %s5, 4
      %s65 = int_to_ptr.hbm [resolvable:$true] %s64
      %s66 = sshll.u32 [#allocation8], 4
      %s67 = int_to_ptr.vmem [resolvable:$true] %s66
      %72 = dma.hbm_to_vmem [thread:$0]  %s65, 2048, %s67, [#allocation9], 128, 128, 8
    $region25: #{tpu_custom_call.1} parent=1 // pred_fallthru
      _
    // Predicated region
    $region26: #{tpu_custom_call.1} parent=1 // pred_check
      _
    $region27: #{tpu_custom_call.1} parent=1 // pred_check_branch
      %74 = sbr.rel (0) target = $region29
    $region28: #{tpu_custom_call.1} parent=1 // pred_region
      _
    $region29: #{tpu_custom_call.1} parent=1 // pred_fallthru
      _
    // Predicated region
    $region30: #{tpu_custom_call.1} parent=1 // pred_check
      _
    $region31: #{tpu_custom_call.1} parent=1 // pred_check_branch
      %76 = sbr.rel (0) target = $region33
    $region32: #{tpu_custom_call.1} parent=1 // pred_region
      _
    $region33: #{tpu_custom_call.1} parent=1 // pred_fallthru
      _
    // Predicated region
    $region34: #{tpu_custom_call.1} parent=1 // pred_check
      _
    $region35: #{tpu_custom_call.1} parent=1 // pred_check_branch
      %78 = sbr.rel (0) target = $region37
    $region36: #{tpu_custom_call.1} parent=1 // pred_region
      _
    $region37: #{tpu_custom_call.1} parent=1 // pred_fallthru
      _
    // Predicated region
    $region38: #{tpu_custom_call.1} parent=1 // pred_check
      _
    $region39: #{tpu_custom_call.1} parent=1 // pred_check_branch
      %80 = sbr.rel (0) target = $region41
    $region40: #{tpu_custom_call.1} parent=1 // pred_region
      %82 = dma.done [#allocation4], 128
    $region41: #{tpu_custom_call.1} parent=1 // pred_fallthru
      _
    // Predicated region
    $region42: #{tpu_custom_call.1} parent=1 // pred_check
      _
    $region43: #{tpu_custom_call.1} parent=1 // pred_check_branch
      %84 = sbr.rel (0) target = $region45
    $region44: #{tpu_custom_call.1} parent=1 // pred_region
      %86 = dma.done [#allocation6], 512
    $region45: #{tpu_custom_call.1} parent=1 // pred_fallthru
      _
    // Predicated region
    $region46: #{tpu_custom_call.1} parent=1 // pred_check
      _
    $region47: #{tpu_custom_call.1} parent=1 // pred_check_branch
      %88 = sbr.rel (0) target = $region49
    $region48: #{tpu_custom_call.1} parent=1 // pred_region
      %90 = dma.done [#allocation6], 2048
    $region49: #{tpu_custom_call.1} parent=1 // pred_fallthru
      _
    // Predicated region
    $region50: #{tpu_custom_call.1} parent=1 // pred_check
      _
    $region51: #{tpu_custom_call.1} parent=1 // pred_check_branch
      %92 = sbr.rel (0) target = $region53
    $region52: #{tpu_custom_call.1} parent=1 // pred_region
      %94 = dma.done [#allocation9], 2048
    $region53: #{tpu_custom_call.1} parent=1 // pred_fallthru
      _
    %v95 = vld [vmem:[#allocation3] sm:$0xff]
    %v96 = vld [vmem:[#allocation5] sm:$0xff]
    %v97 = vld [vmem:[#allocation5 + $0x8] sm:$0xff]
    %v98 = vld [vmem:[#allocation5 + $0x10] sm:$0xff]
    %v99 = vld [vmem:[#allocation5 + $0x18] sm:$0xff]
    %v100 = vld [vmem:[%s2] sm:$0x1]
    %v102 = vperm.slane %v100, 0
    %vm104 = vcmask 261120
    %v106 = vsel %vm104, %v95, 0
    %108 = vmatpush.msra.mxu0 0.0
    %109 = vmatpush.msra.mxu0 0.0
    %110 = vmatpush.msra.mxu0 0.0
    %111 = vmatpush.msra.mxu0 0.0
    %112 = vmatpush.msra.mxu0 0.0
    %113 = vmatpush.msra.mxu0 0.0
    %114 = vmatpush.msra.mxu0 0.0
    %115 = vmatpush.msra.mxu0 0.0
    %116 = vmatpush.msra.mxu0 0.0
    %117 = vmatpush.msra.mxu0 0.0
    %118 = vmatpush.msra.mxu0 0.0
    %119 = vmatpush.msra.mxu0 0.0
    %120 = vmatpush.msra.mxu0 %v99
    %121 = vmatpush.msra.mxu0 %v98
    %122 = vmatpush.msra.mxu0 %v97
    %123 = vmatpush.msra.mxu0 %v96
    %124 = vmatmul.f32.gmra.mxu0 %v106
    %v125 = vpop.f32.mrf.mxu0
    %v126 = vadd.f32 %v102, %v125
    %127 = vdwg.mxu0
    %v128 = vmax.f32 %v126, 0.0
    %v129 = vld [vmem:[#allocation7] sm:$0xff]
    %v130 = vld [vmem:[#allocation7 + $0x8] sm:$0xff]
    %v131 = vld [vmem:[#allocation7 + $0x10] sm:$0xff]
    %v132 = vld [vmem:[#allocation7 + $0x18] sm:$0xff]
    %v133 = vld [vmem:[#allocation7 + $0x20] sm:$0xff]
    %v134 = vld [vmem:[#allocation7 + $0x28] sm:$0xff]
    %v135 = vld [vmem:[#allocation7 + $0x30] sm:$0xff]
    %v136 = vld [vmem:[#allocation7 + $0x38] sm:$0xff]
    %v137 = vld [vmem:[#allocation7 + $0x40] sm:$0xff]
    %v138 = vld [vmem:[#allocation7 + $0x48] sm:$0xff]
    %v139 = vld [vmem:[#allocation7 + $0x50] sm:$0xff]
    %v140 = vld [vmem:[#allocation7 + $0x58] sm:$0xff]
    %v141 = vld [vmem:[#allocation7 + $0x60] sm:$0xff]
    %v142 = vld [vmem:[#allocation7 + $0x68] sm:$0xff]
    %v143 = vld [vmem:[#allocation7 + $0x70] sm:$0xff]
    %v144 = vld [vmem:[#allocation7 + $0x78] sm:$0xff]
    %v145 = vld [vmem:[%s4] sm:$0x1]
    %v147 = vperm.slane %v145, 0
    %149 = vmatpush.msra.mxu0 %v144
    %150 = vmatpush.msra.mxu0 %v143
    %151 = vmatpush.msra.mxu0 %v142
    %152 = vmatpush.msra.mxu0 %v141
    %153 = vmatpush.msra.mxu0 %v140
    %154 = vmatpush.msra.mxu0 %v139
    %155 = vmatpush.msra.mxu0 %v138
    %156 = vmatpush.msra.mxu0 %v137
    %157 = vmatpush.msra.mxu0 %v136
    %158 = vmatpush.msra.mxu0 %v135
    %159 = vmatpush.msra.mxu0 %v134
    %160 = vmatpush.msra.mxu0 %v133
    %161 = vmatpush.msra.mxu0 %v132
    %162 = vmatpush.msra.mxu0 %v131
    %163 = vmatpush.msra.mxu0 %v130
    %164 = vmatpush.msra.mxu0 %v129
    %165 = vmatmul.f32.gmra.mxu0 %v128
    %v166 = vpop.f32.mrf.mxu0
    %v167 = vadd.f32 %v147, %v166
    %168 = vdwg.mxu0
    %v169 = vmax.f32 %v167, 0.0
    %v170 = vld [vmem:[#allocation8] sm:$0xff]
    %v171 = vld [vmem:[#allocation8 + $0x8] sm:$0xff]
    %v172 = vld [vmem:[#allocation8 + $0x10] sm:$0xff]
    %v173 = vld [vmem:[#allocation8 + $0x18] sm:$0xff]
    %v174 = vld [vmem:[#allocation8 + $0x20] sm:$0xff]
    %v175 = vld [vmem:[#allocation8 + $0x28] sm:$0xff]
    %v176 = vld [vmem:[#allocation8 + $0x30] sm:$0xff]
    %v177 = vld [vmem:[#allocation8 + $0x38] sm:$0xff]
    %v178 = vld [vmem:[#allocation8 + $0x40] sm:$0xff]
    %v179 = vld [vmem:[#allocation8 + $0x48] sm:$0xff]
    %v180 = vld [vmem:[#allocation8 + $0x50] sm:$0xff]
    %v181 = vld [vmem:[#allocation8 + $0x58] sm:$0xff]
    %v182 = vld [vmem:[#allocation8 + $0x60] sm:$0xff]
    %v183 = vld [vmem:[#allocation8 + $0x68] sm:$0xff]
    %v184 = vld [vmem:[#allocation8 + $0x70] sm:$0xff]
    %v185 = vld [vmem:[#allocation8 + $0x78] sm:$0xff]
    %v186 = vld [vmem:[%s6] sm:$0x1]
    %v188 = vperm.slane %v186, 0
    %190 = vmatpush.msra.mxu0 %v185
    %191 = vmatpush.msra.mxu0 %v184
    %192 = vmatpush.msra.mxu0 %v183
    %193 = vmatpush.msra.mxu0 %v182
    %194 = vmatpush.msra.mxu0 %v181
    %195 = vmatpush.msra.mxu0 %v180
    %196 = vmatpush.msra.mxu0 %v179
    %197 = vmatpush.msra.mxu0 %v178
    %198 = vmatpush.msra.mxu0 %v177
    %199 = vmatpush.msra.mxu0 %v176
    %200 = vmatpush.msra.mxu0 %v175
    %201 = vmatpush.msra.mxu0 %v174
    %202 = vmatpush.msra.mxu0 %v173
    %203 = vmatpush.msra.mxu0 %v172
    %204 = vmatpush.msra.mxu0 %v171
    %205 = vmatpush.msra.mxu0 %v170
    %206 = vmatmul.f32.gmra.mxu0 %v169
    %v207 = vpop.f32.mrf.mxu0
    %v208 = vadd.f32 %v188, %v207
    %209 = vdwg.mxu0
    %v210 = vmax.f32 %v208, 0.0
    %v211 = vld [vmem:[%s7] sm:$0x1]
    %v213 = vperm.slane %v211, 0
    %v215 = vmul.f32 %v210, %v213
    %216 = vadd.xlane.f32.xlu0 %v215
    %v217 = vpop.xlane.xlu0 %216
    %v218 = vld [vmem:[#allocation2] sm:$0x1]
    %v220 = vperm.slane %v218, 0
    %v222 = vadd.f32 %v217, %v220
    %vm223 = vcmask 7168
    %224 = vst.msk [vmem:[%s9] sm:$0xff] %vm223, %v222
    // Predicated region
    $region54: #{tpu_custom_call.1} parent=1 // pred_check
      _
    $region55: #{tpu_custom_call.1} parent=1 // pred_check_branch
      %226 = sbr.rel (0) target = $region57
    $region56: #{tpu_custom_call.1} parent=1 // pred_region
      _
    $region57: #{tpu_custom_call.1} parent=1 // pred_fallthru
      _
    // Predicated region
    $region58: #{tpu_custom_call.1} parent=1 // pred_check
      _
    $region59: #{tpu_custom_call.1} parent=1 // pred_check_branch
      %228 = sbr.rel (0) target = $region61
    $region60: #{tpu_custom_call.1} parent=1 // pred_region
      _
    $region61: #{tpu_custom_call.1} parent=1 // pred_fallthru
      _
    %229 = vsyncpa [#allocation4], 1
    %230 = vsyncpa [#allocation6], 1
    %231 = vsyncpa [#allocation9], 1

</llo_original>
